<compile_context>
chip_gen: v7x
topology: tpu7x:2x2x1
jax: 0.10.0
libtpu: 0.0.40
codegen_flags: <defaults>
</compile_context>

<pallas_src>
import functools

import jax
import jax.numpy as jnp
from jax.experimental import pallas as pl
from jax.experimental.pallas import tpu as pltpu


def _margin_ce_kernel(scores_ref, labels_ref, out_ref, *, margin, inv_c,
                      tile_n, n_rows, mask_rows):
    s = scores_ref[...].astype(jnp.float32)          # (TILE_N, C)
    l = labels_ref[...].astype(jnp.float32)          # (TILE_N, C)

    # Numerically stable log-softmax pieces along the class (lane) axis.
    m = jnp.max(s, axis=-1, keepdims=True)
    shifted = s - m
    lse = jnp.log(jnp.sum(jnp.exp(shifted), axis=-1, keepdims=True))
    sum_l = jnp.sum(l, axis=-1, keepdims=True)

    # relu(mean_c((scores - labels)^2) - margin)
    diff = s - l
    mse = jnp.sum(diff * diff, axis=-1, keepdims=True) * inv_c
    margin_term = jnp.maximum(mse - margin, 0.0)     # (TILE_N, 1)

    # -(labels * log_probs).sum(1) == lse*sum(labels) - sum(labels*shifted).
    # The second term is linear in the final tile sum, so fold it into one
    # tile-wide reduction instead of a per-row lane reduce.
    row_term = lse * sum_l + margin_term             # (TILE_N, 1)
    ce_lin = l * shifted                             # (TILE_N, C)

    if mask_rows:
        # Mask rows past the true batch size (last tile may be padded).
        i = pl.program_id(0)
        row_ids = i * tile_n + jax.lax.broadcasted_iota(
            jnp.int32, (tile_n, 1), 0)
        valid = row_ids < n_rows                     # (TILE_N, 1)
        row_term = jnp.where(valid, row_term, 0.0)
        ce_lin = jnp.where(valid, ce_lin, 0.0)

    tile_sum = jnp.sum(row_term) - jnp.sum(ce_lin)

    # Lane-dense (1, 128) write (unmasked vst); wrapper reads lane 0 per tile.
    out_ref[...] = jnp.full((1, 128), tile_sum, dtype=jnp.float32)


def _tpu_vmem_profile():
    """Return (physical_vmem_bytes, is_v7x) with conservative fallbacks."""
    phys_vmem = 128 * 1024 * 1024
    is_v7 = False
    try:
        kind = jax.devices()[0].device_kind.lower()
        is_v7 = "v7" in kind
    except Exception:
        pass
    if is_v7:
        phys_vmem = 64 * 1024 * 1024
    try:
        info = pltpu.get_tpu_info()
        phys_vmem = int(getattr(info, "vmem_capacity_bytes", phys_vmem))
    except Exception:
        pass
    return phys_vmem, is_v7


def margin_cross_entropy_loss(scores, labels, *, margin=0.05, tile_n=None):
    """Pallas TPU implementation of MarginCrossEntropyLoss.forward."""
    scores = jnp.asarray(scores)
    labels = jnp.asarray(labels)
    if scores.shape != labels.shape:
        raise ValueError(
            f"Shape mismatch: scores {scores.shape} != labels {labels.shape}")
    if scores.ndim != 2:
        raise ValueError("expected 2-D (batch, classes) inputs")
    n, c = scores.shape

    phys_vmem, is_v7 = _tpu_vmem_profile()
    big_vmem = phys_vmem >= 100 * 1024 * 1024        # v5e / v6e (128 MiB)

    if big_vmem:
        vmem_budget = 64 * 1024 * 1024   # working set: DMA bufs + f32 temps
        vmem_limit = 96 * 1024 * 1024    # raise v5e's 16 MiB / v6e's 32 MiB default
        num_buffers = 3                  # deeper buffering hides slower HBM feed
    else:
        vmem_budget = 28 * 1024 * 1024   # v7x: only 64 MiB physical VMEM
        vmem_limit = 48 * 1024 * 1024
        num_buffers = 2
    vmem_limit = min(vmem_limit, phys_vmem * 3 // 4)
    vmem_budget = min(vmem_budget, phys_vmem * 7 // 16)

    s_isz = scores.dtype.itemsize
    l_isz = labels.dtype.itemsize
    # Sublane packing granularity of the narrowest input dtype
    # (8 rows for 4-byte, 16 for 2-byte, 32 for 1-byte elements).
    gran = max(8, 32 // max(1, min(s_isz, l_isz)))

    if tile_n is None:
        # Per-row working-set bytes: `num_buffers` pipeline copies of both
        # inputs in their wire dtype plus ~4 live f32 tile temporaries
        # (shifted, exp(shifted), labels*shifted, diff^2) at 16 B/element.
        bytes_per_row = c * (num_buffers * (s_isz + l_isz) + 16)
        tile_n = max(gran, vmem_budget // bytes_per_row)
    # Never bigger than the (granularity-padded) batch; keep the sublane dim a
    # multiple of the dtype-native granularity.
    tile_n = min(int(tile_n), pl.cdiv(n, gran) * gran)
    tile_n = max(gran, (tile_n // gran) * gran)

    num_tiles = pl.cdiv(n, tile_n)
    mask_rows = (n % tile_n) != 0

    kernel = functools.partial(
        _margin_ce_kernel,
        margin=float(margin),
        inv_c=1.0 / float(c),
        tile_n=int(tile_n),
        n_rows=int(n),
        mask_rows=bool(mask_rows),
    )

    # v7x: split the batch grid across both TensorCores; v5e/v6e: 1 TC.
    dim_sem = (pltpu.CORE_PARALLEL,) if is_v7 else ("parallel",)

    def build(depth):
        if depth > 2:
            in_spec = pl.BlockSpec((tile_n, c), lambda i: (i, 0),
                                   pipeline_mode=pl.Buffered(depth))
        else:
            in_spec = pl.BlockSpec((tile_n, c), lambda i: (i, 0))
        return pl.pallas_call(
            kernel,
            out_shape=jax.ShapeDtypeStruct((1, num_tiles * 128), jnp.float32),
            grid_spec=pltpu.PrefetchScalarGridSpec(
                num_scalar_prefetch=0,
                grid=(num_tiles,),
                in_specs=[in_spec, in_spec],
                out_specs=pl.BlockSpec((1, 128), lambda i: (0, i)),
            ),
            compiler_params=pltpu.CompilerParams(
                dimension_semantics=dim_sem,
                vmem_limit_bytes=int(vmem_limit),
            ),
        )

    try:
        partials = build(num_buffers)(scores, labels)
    except Exception:
        if num_buffers <= 2:
            raise
        # Fall back to the default double-buffered pipeline if the deeper
        # buffering request is rejected by this toolchain (math identical).
        partials = build(2)(scores, labels)

    # One partial per tile, replicated across its 128-lane slab; take lane 0.
    per_tile = partials.reshape(num_tiles, 128)[:, 0]
    return jnp.sum(per_tile) / n


if __name__ == "__main__":
    # Small (batch, classes) shapes; N deliberately not a multiple of TILE_N
    # so the ragged-last-tile masking path is exercised.
    N, C = 20, 128
    key = jax.random.PRNGKey(0)
    k_scores, k_labels = jax.random.split(key)

    scores = jax.random.normal(k_scores, (N, C), dtype=jnp.float32)
    # Soft-target probability distributions along dim=1 (typical usage).
    labels = jax.nn.softmax(
        jax.random.normal(k_labels, (N, C), dtype=jnp.float32), axis=1)

    margin = 0.05

    def ref_loss(s, l):
        s = s.astype(jnp.float32)
        l = l.astype(jnp.float32)
        log_probs = jax.nn.log_softmax(s, axis=1)
        soft_ce = jnp.mean(-jnp.sum(l * log_probs, axis=1))
        mse = jnp.mean((s - l) ** 2, axis=1)
        return soft_ce + jnp.mean(jnp.maximum(mse - margin, 0.0))

    # Multi-tile ragged path (grid of 3, last tile masked).
    loss_tiled = margin_cross_entropy_loss(scores, labels, margin=margin,
                                           tile_n=8)
    jax.block_until_ready(loss_tiled)
    # Auto-tiled path (single byte-budgeted tile covering the padded batch).
    loss_auto = margin_cross_entropy_loss(scores, labels, margin=margin)
    jax.block_until_ready(loss_auto)

    loss_ref = ref_loss(scores, labels)
    assert jnp.allclose(loss_tiled, loss_ref, rtol=1e-5, atol=1e-6), (
        loss_tiled, loss_ref)
    assert jnp.allclose(loss_auto, loss_ref, rtol=1e-5, atol=1e-6), (
        loss_auto, loss_ref)

    # bf16 inputs: exercises the 16-row sublane-granularity path.
    scores_bf = scores.astype(jnp.bfloat16)
    labels_bf = labels.astype(jnp.bfloat16)
    loss_bf = margin_cross_entropy_loss(scores_bf, labels_bf, margin=margin,
                                        tile_n=16)
    jax.block_until_ready(loss_bf)
    loss_bf_ref = ref_loss(scores_bf, labels_bf)
    assert jnp.allclose(loss_bf, loss_bf_ref, rtol=1e-4, atol=1e-5), (
        loss_bf, loss_bf_ref)

    print("KERNEL_OK")
</pallas_src>

<mosaic_0001>
module attributes {stable_mosaic.version = 11 : i64} {
  func.func @_margin_ce_kernel(%arg0: i32, %arg1: memref<8x128xf32, #tpu.memory_space<vmem>>, %arg2: memref<8x128xf32, #tpu.memory_space<vmem>>, %arg3: memref<1x128xf32, #tpu.memory_space<vmem>>) attributes {dimension_semantics = [#tpu.dimension_semantics<parallel>], iteration_bounds = array<i64: 3>, scalar_prefetch = 0 : i64, scratch_operands = 0 : i64, tpu.core_type = #tpu.core_type<tc>, window_params = [{transform_indices = @transform_0, window_bounds = array<i64: 8, 128>}, {transform_indices = @transform_1, window_bounds = array<i64: 8, 128>}, {transform_indices = @transform_2, window_bounds = array<i64: 1, 128>}]} {
    %c0 = arith.constant 0 : index
    %c0_0 = arith.constant 0 : index
    %0 = vector.load %arg1[%c0, %c0_0] : memref<8x128xf32, #tpu.memory_space<vmem>>, vector<8x128xf32>
    %c0_1 = arith.constant 0 : index
    %c0_2 = arith.constant 0 : index
    %1 = vector.load %arg2[%c0_1, %c0_2] : memref<8x128xf32, #tpu.memory_space<vmem>>, vector<8x128xf32>
    %cst = arith.constant dense<0xFF800000> : vector<8xf32>
    %2 = vector.multi_reduction <maximumf>, %0, %cst [1] : vector<8x128xf32> to vector<8xf32>
    %3 = vector.shape_cast %2 : vector<8xf32> to vector<8x1xf32>
    %4 = vector.broadcast %3 : vector<8x1xf32> to vector<8x128xf32>
    %5 = arith.subf %0, %4 : vector<8x128xf32>
    %6 = math.exp %5 : vector<8x128xf32>
    %cst_3 = arith.constant dense<0.000000e+00> : vector<8xf32>
    %7 = vector.multi_reduction <add>, %6, %cst_3 [1] : vector<8x128xf32> to vector<8xf32>
    %8 = vector.shape_cast %7 : vector<8xf32> to vector<8x1xf32>
    %9 = math.log %8 : vector<8x1xf32>
    %cst_4 = arith.constant dense<0.000000e+00> : vector<8xf32>
    %10 = vector.multi_reduction <add>, %1, %cst_4 [1] : vector<8x128xf32> to vector<8xf32>
    %11 = vector.shape_cast %10 : vector<8xf32> to vector<8x1xf32>
    %12 = arith.subf %0, %1 : vector<8x128xf32>
    %13 = arith.mulf %12, %12 : vector<8x128xf32>
    %cst_5 = arith.constant dense<0.000000e+00> : vector<8xf32>
    %14 = vector.multi_reduction <add>, %13, %cst_5 [1] : vector<8x128xf32> to vector<8xf32>
    %15 = vector.shape_cast %14 : vector<8xf32> to vector<8x1xf32>
    %cst_6 = arith.constant 7.812500e-03 : f32
    %16 = vector.broadcast %cst_6 : f32 to vector<8x1xf32>
    %17 = arith.mulf %15, %16 : vector<8x1xf32>
    %cst_7 = arith.constant 5.000000e-02 : f32
    %18 = vector.broadcast %cst_7 : f32 to vector<8x1xf32>
    %19 = arith.subf %17, %18 : vector<8x1xf32>
    %cst_8 = arith.constant 0.000000e+00 : f32
    %20 = vector.broadcast %cst_8 : f32 to vector<8x1xf32>
    %21 = arith.maximumf %19, %20 : vector<8x1xf32>
    %22 = arith.mulf %9, %11 : vector<8x1xf32>
    %23 = arith.addf %22, %21 : vector<8x1xf32>
    %24 = arith.mulf %1, %5 : vector<8x128xf32>
    %c8_i32 = arith.constant 8 : i32
    %25 = arith.muli %arg0, %c8_i32 : i32
    %26 = tpu.iota {dimensions = array<i32: 0>} : vector<8x1xi32>
    %27 = vector.broadcast %25 : i32 to vector<8x1xi32>
    %28 = arith.addi %27, %26 : vector<8x1xi32>
    %c20_i32 = arith.constant 20 : i32
    %29 = vector.broadcast %c20_i32 : i32 to vector<8x1xi32>
    %30 = arith.cmpi slt, %28, %29 : vector<8x1xi32>
    %cst_9 = arith.constant 0.000000e+00 : f32
    %31 = vector.broadcast %cst_9 : f32 to vector<8x1xf32>
    %32 = arith.select %30, %23, %31 : vector<8x1xi1>, vector<8x1xf32>
    %cst_10 = arith.constant 0.000000e+00 : f32
    %33 = vector.shape_cast %30 : vector<8x1xi1> to vector<8x1xi1>
    %34 = vector.broadcast %33 : vector<8x1xi1> to vector<8x128xi1>
    %35 = vector.broadcast %cst_10 : f32 to vector<8x128xf32>
    %36 = arith.select %34, %24, %35 : vector<8x128xi1>, vector<8x128xf32>
    %37 = vector.shape_cast %32 : vector<8x1xf32> to vector<1x8x1xf32>
    %cst_11 = arith.constant dense<0.000000e+00> : vector<1xf32>
    %38 = vector.multi_reduction <add>, %37, %cst_11 [1, 2] : vector<1x8x1xf32> to vector<1xf32>
    %39 = vector.shape_cast %38 : vector<1xf32> to vector<1x1x1xf32>
    %40 = vector.extract %39[0, 0, 0] : f32 from vector<1x1x1xf32>
    %41 = vector.shape_cast %36 : vector<8x128xf32> to vector<1x8x128xf32>
    %cst_12 = arith.constant dense<0.000000e+00> : vector<1xf32>
    %42 = vector.multi_reduction <add>, %41, %cst_12 [1, 2] : vector<1x8x128xf32> to vector<1xf32>
    %43 = vector.shape_cast %42 : vector<1xf32> to vector<1x1x1xf32>
    %44 = vector.extract %43[0, 0, 0] : f32 from vector<1x1x1xf32>
    %45 = arith.subf %40, %44 : f32
    %46 = vector.broadcast %45 : f32 to vector<1x128xf32>
    %c0_13 = arith.constant 0 : index
    %c0_14 = arith.constant 0 : index
    %47 = vector.load %arg3[%c0_13, %c0_14] : memref<1x128xf32, #tpu.memory_space<vmem>>, vector<1x128xf32>
    tpu.vector_store %arg3[%c0_13, %c0_14], %46 {strides = array<i32>} : memref<1x128xf32, #tpu.memory_space<vmem>>, vector<1x128xf32>,
    return
  }
  func.func @transform_0(%arg0: i32) -> (i32, i32) {
    %c0_i32 = arith.constant 0 : i32
    %c0_i32_0 = arith.constant 0 : i32
    return %arg0, %c0_i32 : i32, i32
  }
  func.func @transform_1(%arg0: i32) -> (i32, i32) {
    %c0_i32 = arith.constant 0 : i32
    %c0_i32_0 = arith.constant 0 : i32
    return %arg0, %c0_i32 : i32, i32
  }
  func.func @transform_2(%arg0: i32) -> (i32, i32) {
    %c0_i32 = arith.constant 0 : i32
    %c0_i32_0 = arith.constant 0 : i32
    return %c0_i32, %arg0 : i32, i32
  }
}

</mosaic_0001>

<llo_original>
// kernel: tpu_custom_call.1
$region0: #{tpu_custom_call.1}
  #allocation0 [shape = 'u32[]', space=smem, size = 0x4, offset = 0x4, fixed_abs, tag = 'smem constant byte address 0x4 - core index']
  #allocation1 [shape = 'u32[144,128]{1,0:T(1,128)}', space=vmem, size = 0x12000, scoped, tag = 'internal scratch']
  %s0 = inlined_call_operand.hbm [shape: f32[20,128], index: 0, kind: input, shape index: {}]
  %s1 = inlined_call_operand.hbm [shape: f32[20,128], index: 1, kind: input, shape index: {}]
  %s2 = inlined_call_operand.hbm [shape: f32[1,384], index: 2, kind: output, shape index: {}]
  %s3 = sld [smem:[#allocation0]]
  $region49: #{tpu_custom_call.1} parent=0
    _
  %s5 = ssub.s32 1, %s3
  %s6 = scalar_select 0, %s5, %s3
  $region1: #{tpu_custom_call.1} parent=0
    #allocation2 [shape = 'u8[8192]{0}', space=vmem, size = 0x2000, scoped, tag = 'input window, operand 0']
    #allocation3 [shape = 's32[2]{0}', space=sflag, size = 0x8, scoped, tag = 'scoped memory for tpu_custom_call.1']
    #allocation4 [shape = 's32[2]{0}', space=sflag, size = 0x8, scoped, tag = 'scoped memory for tpu_custom_call.1']
    #allocation5 [shape = 'u8[8192]{0}', space=vmem, size = 0x2000, scoped, tag = 'input window, operand 1']
    #allocation6 [shape = 's32[2]{0}', space=sflag, size = 0x8, scoped, tag = 'scoped memory for tpu_custom_call.1']
    #allocation7 [shape = 'u8[1024]{0}', space=vmem, size = 0x400, scoped, tag = 'output window, operand 0']
    %7 = vsyncpa [#allocation3], 0
    %s8 = scalar_lea.sflag [#allocation3], 1
    %9 = vsyncpa %s8, 0
    %10 = vsyncpa [#allocation6], 0
    %s11 = scalar_lea.sflag [#allocation6], 1
    %12 = vsyncpa %s11, 0
    %13 = vsyncpa [#allocation4], 0
    %s14 = scalar_lea.sflag [#allocation4], 1
    %15 = vsyncpa %s14, 0
    loop: start=0, step=1, limit=5
    $region2: #{tpu_custom_call.1} parent=1 // loop_pre_header
      _
    $region3: #{tpu_custom_call.1} parent=1 // loop_header
      %s17 = sphi 0, %s21
      %p18 = scmp.ge.s32.totalorder %s17, 5
      %s27 = sphi 0, %s29
      %s30 = sphi 0, %s27
      %s31 = sphi 0, %s30
      %s47 = sphi 0, %s31
      %s53 = sphi 0, %s55
      %s56 = sphi 0, %s53
      %s57 = sphi 0, %s56
      %s73 = sphi 0, %s57
      %s79 = sphi 0, %s81
      %s82 = sphi 0, %s79
      %s83 = sphi 0, %s82
      %s99 = sphi 0, %s83
    $region4: #{tpu_custom_call.1} parent=1 // loop_header_branch
      %20 = sbr.rel (%p18) target = $region8
    $region5: #{tpu_custom_call.1} parent=1 // loop_body
      %s22 = ssub.s32 %s17, 1
      %s23 = ssub.s32 %s17, 2
      %s24 = sadd.s32 %s17, 1
      %s25 = ssub.s32 %s17, %s24
      %p26 = scmp.eq.s32.totalorder %s25, 0
      %s28 = sadd.s32 %s27, 1
      %s29 = scalar_select %p26, %s27, %s28
      %p32 = pneg %p26
      %p33 = scmp.eq.s32.totalorder %s17, 2
      %p34 = por %p32, %p33
      %p35 = scmp.ne.s32.totalorder %s27, %s30
      %p36 = scmp.eq.s32.totalorder %s17, 0
      %p37 = por %p35, %p36
      %p38 = scmp.ne.s32.totalorder %s27, %s30
      %p39 = scmp.eq.s32.totalorder %s22, 2
      %p40 = por %p38, %p39
      %p41 = scmp.ne.s32.totalorder %s30, %s31
      %p42 = scmp.eq.s32.totalorder %s22, 0
      %p43 = por %p41, %p42
      %p44 = scmp.ne.s32.totalorder %s30, %s31
      %p45 = scmp.eq.s32.totalorder %s23, 2
      %p46 = por %p44, %p45
      %p48 = scmp.ne.s32.totalorder %s31, %s47
      %p49 = scmp.eq.s32.totalorder %s23, 0
      %p50 = por %p48, %p49
      %s51 = ssub.s32 %s17, %s24
      %p52 = scmp.eq.s32.totalorder %s51, 0
      %s54 = sadd.s32 %s53, 1
      %s55 = scalar_select %p52, %s53, %s54
      %p58 = pneg %p52
      %p59 = scmp.eq.s32.totalorder %s17, 2
      %p60 = por %p58, %p59
      %p61 = scmp.ne.s32.totalorder %s53, %s56
      %p62 = scmp.eq.s32.totalorder %s17, 0
      %p63 = por %p61, %p62
      %p64 = scmp.ne.s32.totalorder %s53, %s56
      %p65 = scmp.eq.s32.totalorder %s22, 2
      %p66 = por %p64, %p65
      %p67 = scmp.ne.s32.totalorder %s56, %s57
      %p68 = scmp.eq.s32.totalorder %s22, 0
      %p69 = por %p67, %p68
      %p70 = scmp.ne.s32.totalorder %s56, %s57
      %p71 = scmp.eq.s32.totalorder %s23, 2
      %p72 = por %p70, %p71
      %p74 = scmp.ne.s32.totalorder %s57, %s73
      %p75 = scmp.eq.s32.totalorder %s23, 0
      %p76 = por %p74, %p75
      %s77 = ssub.s32 %s17, %s24
      %p78 = scmp.eq.s32.totalorder %s77, 0
      %s80 = sadd.s32 %s79, 1
      %s81 = scalar_select %p78, %s79, %s80
      %p84 = pneg %p78
      %p85 = scmp.eq.s32.totalorder %s17, 2
      %p86 = por %p84, %p85
      %p87 = scmp.ne.s32.totalorder %s79, %s82
      %p88 = scmp.eq.s32.totalorder %s17, 0
      %p89 = por %p87, %p88
      %p90 = scmp.ne.s32.totalorder %s79, %s82
      %p91 = scmp.eq.s32.totalorder %s22, 2
      %p92 = por %p90, %p91
      %p93 = scmp.ne.s32.totalorder %s82, %s83
      %p94 = scmp.eq.s32.totalorder %s22, 0
      %p95 = por %p93, %p94
      %p96 = scmp.ne.s32.totalorder %s82, %s83
      %p97 = scmp.eq.s32.totalorder %s23, 2
      %p98 = por %p96, %p97
      %p100 = scmp.ne.s32.totalorder %s83, %s99
      %p101 = scmp.eq.s32.totalorder %s23, 0
      %p102 = por %p100, %p101
      %p103 = scmp.le.s32.totalorder 1, %s17
      %p104 = scmp.lt.s32.totalorder %s17, 4
      %p105 = pnand %p103, %p104
      %p106 = pneg %p105
      // Predicated region
      $region9: #{tpu_custom_call.1} parent=5 // pred_check
        _
      $region10: #{tpu_custom_call.1} parent=5 // pred_check_branch
        %108 = sbr.rel (%p105) target = $region12
      $region11: #{tpu_custom_call.1} parent=5 // pred_region
        %s109 = ssub.s32 %s17, 1
      $region12: #{tpu_custom_call.1} parent=5 // pred_fallthru
        _
      %p110 = scmp.lt.s32.totalorder %s17, 3
      // Predicated region
      $region13: #{tpu_custom_call.1} parent=5 // pred_check
        %p111 = pneg %p110
      $region14: #{tpu_custom_call.1} parent=5 // pred_check_branch
        %113 = sbr.rel (%p111) target = $region16
      $region15: #{tpu_custom_call.1} parent=5 // pred_region
        // Predicated region
        $region17: #{tpu_custom_call.1} parent=15 // pred_check
          %p114 = pneg %p37
        $region18: #{tpu_custom_call.1} parent=15 // pred_check_branch
          %116 = sbr.rel (%p114) target = $region20
        $region19: #{tpu_custom_call.1} parent=15 // pred_region
          %s117 = sand.u32 %s27, 1
          %s118 = scalar_lea.sflag [#allocation3], %s117
          %s119 = sand.u32 %s27, 1
          %s120 = smul.addr %s119, 8
          %s121 = scalar_lea.vmem [#allocation2], %s120
          %s123 = ssub.s32 128, 128
          %124 = vsyncadd %s118, %s123
          %s125 = smul.addr %s17, 128
          %s126 = scalar_lea.hbm %s0, %s125
          %s128 = sshll.u32 %s121, 4
          %s129 = int_to_ptr.vmem [resolvable:$true] %s128
          %131 = dma.hbm_to_vmem [thread:$0]  %s126, 128, %s129, %s118
        $region20: #{tpu_custom_call.1} parent=15 // pred_fallthru
          _
        // Predicated region
        $region21: #{tpu_custom_call.1} parent=15 // pred_check
          %p132 = pneg %p63
        $region22: #{tpu_custom_call.1} parent=15 // pred_check_branch
          %134 = sbr.rel (%p132) target = $region24
        $region23: #{tpu_custom_call.1} parent=15 // pred_region
          %s135 = sand.u32 %s53, 1
          %s136 = scalar_lea.sflag [#allocation6], %s135
          %s137 = sand.u32 %s53, 1
          %s138 = smul.addr %s137, 8
          %s139 = scalar_lea.vmem [#allocation5], %s138
          %s141 = ssub.s32 128, 128
          %142 = vsyncadd %s136, %s141
          %s143 = smul.addr %s17, 128
          %s144 = scalar_lea.hbm %s1, %s143
          %s146 = sshll.u32 %s139, 4
          %s147 = int_to_ptr.vmem [resolvable:$true] %s146
          %149 = dma.hbm_to_vmem [thread:$0]  %s144, 128, %s147, %s136
        $region24: #{tpu_custom_call.1} parent=15 // pred_fallthru
          _
      $region16: #{tpu_custom_call.1} parent=5 // pred_fallthru
        _
      %p150 = scmp.le.s32.totalorder 1, %s17
      %p151 = scmp.lt.s32.totalorder %s17, 4
      %p152 = pnand %p150, %p151
      %p153 = pneg %p152
      // Predicated region
      $region25: #{tpu_custom_call.1} parent=5 // pred_check
        _
      $region26: #{tpu_custom_call.1} parent=5 // pred_check_branch
        %155 = sbr.rel (%p152) target = $region28
      $region27: #{tpu_custom_call.1} parent=5 // pred_region
        %s156 = ssub.s32 %s17, 1
        %s157 = sand.u32 %s30, 1
        %s158 = scalar_lea.sflag [#allocation3], %s157
        %s159 = sand.u32 %s30, 1
        %s160 = smul.addr %s159, 8
        %s161 = scalar_lea.vmem [#allocation2], %s160
        // Predicated region
        $region29: #{tpu_custom_call.1} parent=27 // pred_check
          %p162 = pneg %p43
        $region30: #{tpu_custom_call.1} parent=27 // pred_check_branch
          %164 = sbr.rel (%p162) target = $region32
        $region31: #{tpu_custom_call.1} parent=27 // pred_region
          %165 = dma.done %s158, 128
        $region32: #{tpu_custom_call.1} parent=27 // pred_fallthru
          _
        %s166 = sand.u32 %s56, 1
        %s167 = scalar_lea.sflag [#allocation6], %s166
        %s168 = sand.u32 %s56, 1
        %s169 = smul.addr %s168, 8
        %s170 = scalar_lea.vmem [#allocation5], %s169
        // Predicated region
        $region33: #{tpu_custom_call.1} parent=27 // pred_check
          %p171 = pneg %p69
        $region34: #{tpu_custom_call.1} parent=27 // pred_check_branch
          %173 = sbr.rel (%p171) target = $region36
        $region35: #{tpu_custom_call.1} parent=27 // pred_region
          %174 = dma.done %s167, 128
        $region36: #{tpu_custom_call.1} parent=27 // pred_fallthru
          _
        %s175 = sand.u32 %s30, 1
        %s176 = scalar_lea.sflag [#allocation3], %s175
        %s177 = sand.u32 %s30, 1
        %s178 = smul.addr %s177, 8
        %s179 = scalar_lea.vmem [#allocation2], %s178
        %p180 = pneg %p43
        %p181 = pneg %p40
        %s182 = sand.u32 %s56, 1
        %s183 = scalar_lea.sflag [#allocation6], %s182
        %s184 = sand.u32 %s56, 1
        %s185 = smul.addr %s184, 8
        %s186 = scalar_lea.vmem [#allocation5], %s185
        %p187 = pneg %p69
        %p188 = pneg %p66
        %p189 = pneg %p95
        %p190 = pneg %p92
        %s191 = sand.u32 %s82, 1
        %s192 = scalar_lea.sflag [#allocation4], %s191
        %s193 = sand.u32 %s82, 1
        %s194 = scalar_lea.vmem [#allocation7], %s193
        %v195 = vld [vmem:[%s161] sm:$0xff]
        %v196 = vld [vmem:[%s170] sm:$0xff]
        %197 = vmax.xlane.f32.xlu0 %v195
        %v198 = vpop.xlane.xlu0 %197
        %v199 = vsub.f32 %v195, %v198
        %v200 = vmul.f32 %v199, 1.442695
        %v201 = vpow.pop %v200
        %202 = vadd.xlane.f32.xlu0 %v201
        %v203 = vpop.xlane.xlu0 %202
        %v204 = vlog2.pop %v203
        %v205 = vmul.f32 %v204, 0.6931472
        %206 = vadd.xlane.f32.xlu0 %v196
        %v207 = vpop.xlane.xlu0 %206
        %v208 = vsub.f32 %v195, %v196
        %v209 = vmul.f32 %v208, %v208
        %210 = vadd.xlane.f32.xlu0 %v209
        %v211 = vpop.xlane.xlu0 %210
        %v212 = vmul.f32 %v211, 0.0078125
        %v213 = vsub.f32 %v212, 0.05
        %v214 = vmax.f32 %v213, 0.0
        %v215 = vmul.f32 %v205, %v207
        %v216 = vadd.f32 %v215, %v214
        %v217 = vmul.f32 %v196, %v199
        %s218 = smul.u32 %s22, 8
        %v219 = vlaneseq
        %v220 = vshrl.u32 %v219, 7
        %v221 = vstv %s218
        %v222 = vadd.s32 %v221, %v220
        %vm223 = vcmp.lt.s32.totalorder %v222, 20
        %v224 = vsel %vm223, %v216, 0.0
        %v225 = vsel %vm223, 1, 0
        %vm226 = vcmp.eq.s32.totalorder %v225, 1
        %v227 = vsel %vm226, %v217, 0.0
        %vm228 = vcmask 7168
        %v229 = vsel %vm228, %v224, 0.0
        %230 = vadd.xlane.f32.xlu0 %v229
        %v231 = vpop.xlane.xlu0 %230
        %v232 = vrot.slane %v231, 4
        %v233 = vadd.f32 %v231, %v232
        %v234 = vrot.slane %v233, 2
        %v235 = vadd.f32 %v233, %v234
        %v236 = vrot.slane %v235, 1
        %v237 = vadd.f32 %v235, %v236
        %s238 = vtos %v237
        %239 = vadd.xlane.f32.xlu0 %v227
        %v240 = vpop.xlane.xlu0 %239
        %v241 = vrot.slane %v240, 4
        %v242 = vadd.f32 %v240, %v241
        %v243 = vrot.slane %v242, 2
        %v244 = vadd.f32 %v242, %v243
        %v245 = vrot.slane %v244, 1
        %v246 = vadd.f32 %v244, %v245
        %s247 = vtos %v246
        %s248 = ssub.f32 %s238, %s247
        %v249 = vstv %s248
        %250 = vst [vmem:[%s194] sm:$0x1] %v249
        %s251 = sand.u32 %s82, 1
        %s252 = scalar_lea.sflag [#allocation4], %s251
        %s253 = sand.u32 %s82, 1
        %s254 = scalar_lea.vmem [#allocation7], %s253
        // Predicated region
        $region37: #{tpu_custom_call.1} parent=27 // pred_check
          %p255 = pneg %p92
        $region38: #{tpu_custom_call.1} parent=27 // pred_check_branch
          %257 = sbr.rel (%p255) target = $region40
        $region39: #{tpu_custom_call.1} parent=27 // pred_region
          %s259 = ssub.s32 16, 16
          %260 = vsyncadd %s252, %s259
          %s261 = smul.addr %s22, 16
          %s262 = scalar_lea.hbm %s2, %s261
          %s264 = sshll.u32 %s254, 4
          %s265 = int_to_ptr.vmem [resolvable:$true] %s264
          %267 = dma.vmem_to_hbm [thread:$0]  %s265, 16, %s262, %s252
        $region40: #{tpu_custom_call.1} parent=27 // pred_fallthru
          _
      $region28: #{tpu_custom_call.1} parent=5 // pred_fallthru
        _
      %p268 = scmp.le.s32.totalorder 2, %s17
      // Predicated region
      $region41: #{tpu_custom_call.1} parent=5 // pred_check
        %p269 = pneg %p268
      $region42: #{tpu_custom_call.1} parent=5 // pred_check_branch
        %271 = sbr.rel (%p269) target = $region44
      $region43: #{tpu_custom_call.1} parent=5 // pred_region
        %s272 = ssub.s32 %s17, 2
        // Predicated region
        $region45: #{tpu_custom_call.1} parent=43 // pred_check
          %p273 = pneg %p98
        $region46: #{tpu_custom_call.1} parent=43 // pred_check_branch
          %275 = sbr.rel (%p273) target = $region48
        $region47: #{tpu_custom_call.1} parent=43 // pred_region
          %s276 = sand.u32 %s83, 1
          %s277 = scalar_lea.sflag [#allocation4], %s276
          %s278 = sand.u32 %s83, 1
          %s279 = scalar_lea.vmem [#allocation7], %s278
          %280 = dma.done %s277, 16
        $region48: #{tpu_custom_call.1} parent=43 // pred_fallthru
          _
      $region44: #{tpu_custom_call.1} parent=5 // pred_fallthru
        _
    $region6: #{tpu_custom_call.1} parent=1 // loop_footer
      %s21 = sadd.s32 1, %s17
    $region7: #{tpu_custom_call.1} parent=1 // loop_footer_branch
      %16 = sbr.rel target = $region3
    $region8: #{tpu_custom_call.1} parent=1 // loop_exit
      _
    %281 = vsyncpa [#allocation3], 1
    %s282 = scalar_lea.sflag [#allocation3], 1
    %283 = vsyncpa %s282, 1
    %284 = vsyncpa [#allocation6], 1
    %s285 = scalar_lea.sflag [#allocation6], 1
    %286 = vsyncpa %s285, 1
    %287 = vsyncpa [#allocation4], 1
    %s288 = scalar_lea.sflag [#allocation4], 1
    %289 = vsyncpa %s288, 1

</llo_original>
